<compile_context>
chip_gen: v7x
topology: tpu7x:2x2x1
jax: 0.10.0
libtpu: 0.0.40
codegen_flags: <defaults>
</compile_context>

<pallas_src>
import jax
import jax.numpy as jnp
from jax.experimental import pallas as pl
from jax.experimental.pallas import tpu as pltpu


def _spline_identity_kernel(x_ref, params_hbm_ref, z_ref, logdet_ref):
    """Identity spline transform + constant-zero log|det Jacobian|.

    z = x
    logdet[b] = sum_d log(dz_d / dx_d) = sum_d log(1) = 0
    """
    # Identity transform: pure vld/vst hot path (HBM-bandwidth bound).
    z_ref[...] = x_ref[...]

    # log-determinant of the identity is exactly 0: write it directly instead
    # of pushing log(1) through the EUP and a cross-lane reduce.
    logdet_ref[...] = jnp.zeros_like(logdet_ref)

    # params_hbm_ref is intentionally untouched (abstract base-class contract);
    # it stays in HBM (memory_space=pl.ANY) so no DMA is ever issued for it.


class Spline:
    """JAX/Pallas port of the (abstract) PyTorch Spline module."""

    def __init__(self):
        self.conditional = False

    def forward(self, x, params, *, tile_b=1024):
        B, D = x.shape

        # Batch tile: full array if small, otherwise an 8-aligned tile
        # (sublane axis) so the (8, 128) tiling rule is satisfied.
        if B <= tile_b:
            TB = B
        else:
            TB = max(8, (tile_b // 8) * 8)
        grid = (pl.cdiv(B, TB),)

        z, logdet = pl.pallas_call(
            _spline_identity_kernel,
            out_shape=(
                jax.ShapeDtypeStruct((B, D), x.dtype),
                jax.ShapeDtypeStruct((B, 1), jnp.float32),
            ),
            grid_spec=pltpu.PrefetchScalarGridSpec(
                num_scalar_prefetch=0,
                grid=grid,
                in_specs=[
                    pl.BlockSpec((TB, D), lambda i: (i, 0)),
                    # params: never read by the base-class transform -> leave
                    # it in HBM, no auto-DMA, no VMEM double-buffering.
                    pl.BlockSpec(memory_space=pl.ANY),
                ],
                out_specs=[
                    pl.BlockSpec((TB, D), lambda i: (i, 0)),
                    pl.BlockSpec((TB, 1), lambda i: (i, 0)),
                ],
            ),
            compiler_params=pltpu.CompilerParams(
                # Batch tiles are independent -> shard across TensorCores
                # (v7x megacore) and allow full pipelining.
                dimension_semantics=("parallel",),
            ),
            # z is byte-identical to x; alias the buffers so the identity copy
            # does not allocate/write a second (B, D) HBM array.
            input_output_aliases={0: 0},
        )(x, params)
        return z, logdet

    def inverse(self, x, params):
        # TODO(synk): reference Spline.inverse raises NotImplementedError.
        raise NotImplementedError()


if __name__ == "__main__":
    key = jax.random.PRNGKey(0)
    kx, kp = jax.random.split(key)

    # Small shapes; D maps onto the 128-lane axis, B is tiled (grid of 4).
    B, D, K = 512, 128, 8
    x = jax.random.normal(kx, (B, D), dtype=jnp.float32)
    # Deterministically initialized "spline parameters" (unused by the base
    # identity transform, but plumbed through the kernel signature).
    params = jax.random.normal(kp, (B, D, K), dtype=jnp.float32)

    spline = Spline()
    z, logdet = spline.forward(x, params, tile_b=128)
    jax.block_until_ready((z, logdet))

    # Compare against a freshly regenerated reference (x's buffer may be
    # aliased into z).
    x_expected = jax.random.normal(kx, (B, D), dtype=jnp.float32)

    assert z.shape == (B, D) and logdet.shape == (B, 1)
    assert jnp.allclose(z, x_expected)   # identity transform
    assert jnp.allclose(logdet, 0.0)     # zero log-determinant
    print("KERNEL_OK")
</pallas_src>

<mosaic_0001>
module attributes {stable_mosaic.version = 11 : i64} {
  func.func @_spline_identity_kernel(%arg0: i32, %arg1: memref<128x128xf32, #tpu.memory_space<vmem>>, %arg2: memref<512x128x8xf32, #tpu.memory_space<any>>, %arg3: memref<128x128xf32, #tpu.memory_space<vmem>>, %arg4: memref<128x1xf32, #tpu.memory_space<vmem>>) attributes {dimension_semantics = [#tpu.dimension_semantics<parallel>], iteration_bounds = array<i64: 4>, scalar_prefetch = 0 : i64, scratch_operands = 0 : i64, tpu.core_type = #tpu.core_type<tc>, window_params = [{transform_indices = @transform_0, window_bounds = array<i64: 128, 128>}, {}, {transform_indices = @transform_2, window_bounds = array<i64: 128, 128>}, {transform_indices = @transform_3, window_bounds = array<i64: 128, 1>}]} {
    %c0 = arith.constant 0 : index
    %c0_0 = arith.constant 0 : index
    %0 = vector.load %arg1[%c0, %c0_0] : memref<128x128xf32, #tpu.memory_space<vmem>>, vector<128x128xf32>
    %c0_1 = arith.constant 0 : index
    %c0_2 = arith.constant 0 : index
    %1 = vector.load %arg3[%c0_1, %c0_2] : memref<128x128xf32, #tpu.memory_space<vmem>>, vector<128x128xf32>
    tpu.vector_store %arg3[%c0_1, %c0_2], %0 {strides = array<i32>} : memref<128x128xf32, #tpu.memory_space<vmem>>, vector<128x128xf32>,
    %cst = arith.constant 0.000000e+00 : f32
    %2 = vector.broadcast %cst : f32 to vector<128x1xf32>
    %c0_3 = arith.constant 0 : index
    %c0_4 = arith.constant 0 : index
    %3 = vector.load %arg4[%c0_3, %c0_4] : memref<128x1xf32, #tpu.memory_space<vmem>>, vector<128x1xf32>
    tpu.vector_store %arg4[%c0_3, %c0_4], %2 {strides = array<i32>} : memref<128x1xf32, #tpu.memory_space<vmem>>, vector<128x1xf32>,
    return
  }
  func.func @transform_0(%arg0: i32) -> (i32, i32) {
    %c0_i32 = arith.constant 0 : i32
    %c0_i32_0 = arith.constant 0 : i32
    return %arg0, %c0_i32 : i32, i32
  }
  func.func @transform_2(%arg0: i32) -> (i32, i32) {
    %c0_i32 = arith.constant 0 : i32
    %c0_i32_0 = arith.constant 0 : i32
    return %arg0, %c0_i32 : i32, i32
  }
  func.func @transform_3(%arg0: i32) -> (i32, i32) {
    %c0_i32 = arith.constant 0 : i32
    %c0_i32_0 = arith.constant 0 : i32
    return %arg0, %c0_i32 : i32, i32
  }
}

</mosaic_0001>

<llo_original>
// kernel: tpu_custom_call.1
$region0: #{tpu_custom_call.1}
  #allocation0 [shape = 'u32[]', space=smem, size = 0x4, offset = 0x4, fixed_abs, tag = 'smem constant byte address 0x4 - core index']
  #allocation1 [shape = 'u32[144,128]{1,0:T(1,128)}', space=vmem, size = 0x12000, scoped, tag = 'internal scratch']
  %s0 = inlined_call_operand.hbm [shape: f32[512,128], index: 0, kind: input, shape index: {}, may-alias: {0,2}]
  %s1 = inlined_call_operand.vmem [shape: f32[512,128,8], index: 1, kind: input, shape index: {}]
  %s2 = inlined_call_operand.hbm [shape: f32[512,128], index: 2, kind: output, shape index: {0}, may-alias: {0,2}]
  %s3 = inlined_call_operand.hbm [shape: f32[512,1], index: 3, kind: output, shape index: {1}]
  %4 = xla_tuple %s2, %s3
  %s5 = sld [smem:[#allocation0]]
  $region49: #{tpu_custom_call.1} parent=0
    _
  %s7 = ssub.s32 1, %s5
  %s8 = scalar_select 0, %s7, %s5
  $region1: #{tpu_custom_call.1} parent=0
    #allocation2 [shape = 'u8[131072]{0}', space=vmem, size = 0x20000, scoped, tag = 'input window, operand 0']
    #allocation3 [shape = 's32[2]{0}', space=sflag, size = 0x8, scoped, tag = 'scoped memory for tpu_custom_call.1']
    #allocation4 [shape = 's32[2]{0}', space=sflag, size = 0x8, scoped, tag = 'scoped memory for tpu_custom_call.1']
    #allocation5 [shape = 'u8[131072]{0}', space=vmem, size = 0x20000, scoped, tag = 'output window, operand 0']
    #allocation6 [shape = 'u8[131072]{0}', space=vmem, size = 0x20000, scoped, tag = 'output window, operand 1']
    #allocation7 [shape = 's32[2]{0}', space=sflag, size = 0x8, scoped, tag = 'scoped memory for tpu_custom_call.1']
    %9 = vsyncpa [#allocation3], 0
    %s10 = scalar_lea.sflag [#allocation3], 1
    %11 = vsyncpa %s10, 0
    %12 = vsyncpa [#allocation4], 0
    %s13 = scalar_lea.sflag [#allocation4], 1
    %14 = vsyncpa %s13, 0
    %15 = vsyncpa [#allocation7], 0
    %s16 = scalar_lea.sflag [#allocation7], 1
    %17 = vsyncpa %s16, 0
    loop: start=0, step=1, limit=6
    $region2: #{tpu_custom_call.1} parent=1 // loop_pre_header
      _
    $region3: #{tpu_custom_call.1} parent=1 // loop_header
      %s19 = sphi 0, %s23
      %p20 = scmp.ge.s32.totalorder %s19, 6
      %s29 = sphi 0, %s31
      %s32 = sphi 0, %s29
      %s33 = sphi 0, %s32
      %s49 = sphi 0, %s33
      %s55 = sphi 0, %s57
      %s58 = sphi 0, %s55
      %s59 = sphi 0, %s58
      %s75 = sphi 0, %s59
      %s81 = sphi 0, %s83
      %s84 = sphi 0, %s81
      %s85 = sphi 0, %s84
      %s101 = sphi 0, %s85
    $region4: #{tpu_custom_call.1} parent=1 // loop_header_branch
      %22 = sbr.rel (%p20) target = $region8
    $region5: #{tpu_custom_call.1} parent=1 // loop_body
      %s24 = ssub.s32 %s19, 1
      %s25 = ssub.s32 %s19, 2
      %s26 = sadd.s32 %s19, 1
      %s27 = ssub.s32 %s19, %s26
      %p28 = scmp.eq.s32.totalorder %s27, 0
      %s30 = sadd.s32 %s29, 1
      %s31 = scalar_select %p28, %s29, %s30
      %p34 = pneg %p28
      %p35 = scmp.eq.s32.totalorder %s19, 3
      %p36 = por %p34, %p35
      %p37 = scmp.ne.s32.totalorder %s29, %s32
      %p38 = scmp.eq.s32.totalorder %s19, 0
      %p39 = por %p37, %p38
      %p40 = scmp.ne.s32.totalorder %s29, %s32
      %p41 = scmp.eq.s32.totalorder %s24, 3
      %p42 = por %p40, %p41
      %p43 = scmp.ne.s32.totalorder %s32, %s33
      %p44 = scmp.eq.s32.totalorder %s24, 0
      %p45 = por %p43, %p44
      %p46 = scmp.ne.s32.totalorder %s32, %s33
      %p47 = scmp.eq.s32.totalorder %s25, 3
      %p48 = por %p46, %p47
      %p50 = scmp.ne.s32.totalorder %s33, %s49
      %p51 = scmp.eq.s32.totalorder %s25, 0
      %p52 = por %p50, %p51
      %s53 = ssub.s32 %s19, %s26
      %p54 = scmp.eq.s32.totalorder %s53, 0
      %s56 = sadd.s32 %s55, 1
      %s57 = scalar_select %p54, %s55, %s56
      %p60 = pneg %p54
      %p61 = scmp.eq.s32.totalorder %s19, 3
      %p62 = por %p60, %p61
      %p63 = scmp.ne.s32.totalorder %s55, %s58
      %p64 = scmp.eq.s32.totalorder %s19, 0
      %p65 = por %p63, %p64
      %p66 = scmp.ne.s32.totalorder %s55, %s58
      %p67 = scmp.eq.s32.totalorder %s24, 3
      %p68 = por %p66, %p67
      %p69 = scmp.ne.s32.totalorder %s58, %s59
      %p70 = scmp.eq.s32.totalorder %s24, 0
      %p71 = por %p69, %p70
      %p72 = scmp.ne.s32.totalorder %s58, %s59
      %p73 = scmp.eq.s32.totalorder %s25, 3
      %p74 = por %p72, %p73
      %p76 = scmp.ne.s32.totalorder %s59, %s75
      %p77 = scmp.eq.s32.totalorder %s25, 0
      %p78 = por %p76, %p77
      %s79 = ssub.s32 %s19, %s26
      %p80 = scmp.eq.s32.totalorder %s79, 0
      %s82 = sadd.s32 %s81, 1
      %s83 = scalar_select %p80, %s81, %s82
      %p86 = pneg %p80
      %p87 = scmp.eq.s32.totalorder %s19, 3
      %p88 = por %p86, %p87
      %p89 = scmp.ne.s32.totalorder %s81, %s84
      %p90 = scmp.eq.s32.totalorder %s19, 0
      %p91 = por %p89, %p90
      %p92 = scmp.ne.s32.totalorder %s81, %s84
      %p93 = scmp.eq.s32.totalorder %s24, 3
      %p94 = por %p92, %p93
      %p95 = scmp.ne.s32.totalorder %s84, %s85
      %p96 = scmp.eq.s32.totalorder %s24, 0
      %p97 = por %p95, %p96
      %p98 = scmp.ne.s32.totalorder %s84, %s85
      %p99 = scmp.eq.s32.totalorder %s25, 3
      %p100 = por %p98, %p99
      %p102 = scmp.ne.s32.totalorder %s85, %s101
      %p103 = scmp.eq.s32.totalorder %s25, 0
      %p104 = por %p102, %p103
      %p105 = scmp.le.s32.totalorder 1, %s19
      %p106 = scmp.lt.s32.totalorder %s19, 5
      %p107 = pnand %p105, %p106
      %p108 = pneg %p107
      // Predicated region
      $region9: #{tpu_custom_call.1} parent=5 // pred_check
        _
      $region10: #{tpu_custom_call.1} parent=5 // pred_check_branch
        %110 = sbr.rel (%p107) target = $region12
      $region11: #{tpu_custom_call.1} parent=5 // pred_region
        %s111 = ssub.s32 %s19, 1
      $region12: #{tpu_custom_call.1} parent=5 // pred_fallthru
        _
      %p112 = scmp.lt.s32.totalorder %s19, 4
      // Predicated region
      $region13: #{tpu_custom_call.1} parent=5 // pred_check
        %p113 = pneg %p112
      $region14: #{tpu_custom_call.1} parent=5 // pred_check_branch
        %115 = sbr.rel (%p113) target = $region16
      $region15: #{tpu_custom_call.1} parent=5 // pred_region
        // Predicated region
        $region17: #{tpu_custom_call.1} parent=15 // pred_check
          %p116 = pneg %p39
        $region18: #{tpu_custom_call.1} parent=15 // pred_check_branch
          %118 = sbr.rel (%p116) target = $region20
        $region19: #{tpu_custom_call.1} parent=15 // pred_region
          %s119 = sand.u32 %s29, 1
          %s120 = scalar_lea.sflag [#allocation3], %s119
          %s121 = sand.u32 %s29, 1
          %s122 = smul.addr %s121, 128
          %s123 = scalar_lea.vmem [#allocation2], %s122
          %s124 = smul.u32 16, %s19
          %s126 = ssub.s32 2048, 2048
          %127 = vsyncadd %s120, %s126
          %s128 = smul.addr %s124, 128
          %s129 = scalar_lea.hbm %s0, %s128
          %s130 = sshll.u32 %s123, 4
          %s131 = int_to_ptr.vmem [resolvable:$true] %s130
          %136 = dma.hbm_to_vmem [thread:$0]  %s129, 2048, %s131, %s120, 128, 128, 8
        $region20: #{tpu_custom_call.1} parent=15 // pred_fallthru
          _
      $region16: #{tpu_custom_call.1} parent=5 // pred_fallthru
        _
      %p137 = scmp.le.s32.totalorder 1, %s19
      %p138 = scmp.lt.s32.totalorder %s19, 5
      %p139 = pnand %p137, %p138
      %p140 = pneg %p139
      // Predicated region
      $region21: #{tpu_custom_call.1} parent=5 // pred_check
        _
      $region22: #{tpu_custom_call.1} parent=5 // pred_check_branch
        %142 = sbr.rel (%p139) target = $region24
      $region23: #{tpu_custom_call.1} parent=5 // pred_region
        %s143 = ssub.s32 %s19, 1
        %s144 = sand.u32 %s32, 1
        %s145 = scalar_lea.sflag [#allocation3], %s144
        %s146 = sand.u32 %s32, 1
        %s147 = smul.addr %s146, 128
        %s148 = scalar_lea.vmem [#allocation2], %s147
        // Predicated region
        $region25: #{tpu_custom_call.1} parent=23 // pred_check
          %p149 = pneg %p45
        $region26: #{tpu_custom_call.1} parent=23 // pred_check_branch
          %151 = sbr.rel (%p149) target = $region28
        $region27: #{tpu_custom_call.1} parent=23 // pred_region
          %152 = dma.done %s145, 2048
        $region28: #{tpu_custom_call.1} parent=23 // pred_fallthru
          _
        %s153 = sand.u32 %s32, 1
        %s154 = scalar_lea.sflag [#allocation3], %s153
        %s155 = sand.u32 %s32, 1
        %s156 = smul.addr %s155, 128
        %s157 = scalar_lea.vmem [#allocation2], %s156
        %p158 = pneg %p45
        %p159 = pneg %p42
        %p160 = pneg %p71
        %p161 = pneg %p68
        %s162 = sand.u32 %s58, 1
        %s163 = scalar_lea.sflag [#allocation4], %s162
        %s164 = sand.u32 %s58, 1
        %s165 = smul.addr %s164, 128
        %s166 = scalar_lea.vmem [#allocation5], %s165
        %p167 = pneg %p97
        %p168 = pneg %p94
        %s169 = sand.u32 %s84, 1
        %s170 = scalar_lea.sflag [#allocation7], %s169
        %s171 = sand.u32 %s84, 1
        %s172 = smul.addr %s171, 128
        %s173 = scalar_lea.vmem [#allocation6], %s172
        %s174 = smul.u32 16, %s24
        %s175 = smul.u32 16, %s24
        %s176 = smul.u32 16, %s24
        %v177 = vld [vmem:[%s148] sm:$0xff]
        %v178 = vld [vmem:[%s148 + $0x8] sm:$0xff]
        %v179 = vld [vmem:[%s148 + $0x10] sm:$0xff]
        %v180 = vld [vmem:[%s148 + $0x18] sm:$0xff]
        %v181 = vld [vmem:[%s148 + $0x20] sm:$0xff]
        %v182 = vld [vmem:[%s148 + $0x28] sm:$0xff]
        %v183 = vld [vmem:[%s148 + $0x30] sm:$0xff]
        %v184 = vld [vmem:[%s148 + $0x38] sm:$0xff]
        %v185 = vld [vmem:[%s148 + $0x40] sm:$0xff]
        %v186 = vld [vmem:[%s148 + $0x48] sm:$0xff]
        %v187 = vld [vmem:[%s148 + $0x50] sm:$0xff]
        %v188 = vld [vmem:[%s148 + $0x58] sm:$0xff]
        %v189 = vld [vmem:[%s148 + $0x60] sm:$0xff]
        %v190 = vld [vmem:[%s148 + $0x68] sm:$0xff]
        %v191 = vld [vmem:[%s148 + $0x70] sm:$0xff]
        %v192 = vld [vmem:[%s148 + $0x78] sm:$0xff]
        %193 = vst [vmem:[%s166] sm:$0xff] %v177
        %194 = vst [vmem:[%s166 + $0x8] sm:$0xff] %v178
        %195 = vst [vmem:[%s166 + $0x10] sm:$0xff] %v179
        %196 = vst [vmem:[%s166 + $0x18] sm:$0xff] %v180
        %197 = vst [vmem:[%s166 + $0x20] sm:$0xff] %v181
        %198 = vst [vmem:[%s166 + $0x28] sm:$0xff] %v182
        %199 = vst [vmem:[%s166 + $0x30] sm:$0xff] %v183
        %200 = vst [vmem:[%s166 + $0x38] sm:$0xff] %v184
        %201 = vst [vmem:[%s166 + $0x40] sm:$0xff] %v185
        %202 = vst [vmem:[%s166 + $0x48] sm:$0xff] %v186
        %203 = vst [vmem:[%s166 + $0x50] sm:$0xff] %v187
        %204 = vst [vmem:[%s166 + $0x58] sm:$0xff] %v188
        %205 = vst [vmem:[%s166 + $0x60] sm:$0xff] %v189
        %206 = vst [vmem:[%s166 + $0x68] sm:$0xff] %v190
        %207 = vst [vmem:[%s166 + $0x70] sm:$0xff] %v191
        %208 = vst [vmem:[%s166 + $0x78] sm:$0xff] %v192
        %vm209 = vcmask 7168
        %210 = vst.msk [vmem:[%s173] sm:$0xff] %vm209, 0.0
        %211 = vst.msk [vmem:[%s173 + $0x8] sm:$0xff] %vm209, 0.0
        %212 = vst.msk [vmem:[%s173 + $0x10] sm:$0xff] %vm209, 0.0
        %213 = vst.msk [vmem:[%s173 + $0x18] sm:$0xff] %vm209, 0.0
        %214 = vst.msk [vmem:[%s173 + $0x20] sm:$0xff] %vm209, 0.0
        %215 = vst.msk [vmem:[%s173 + $0x28] sm:$0xff] %vm209, 0.0
        %216 = vst.msk [vmem:[%s173 + $0x30] sm:$0xff] %vm209, 0.0
        %217 = vst.msk [vmem:[%s173 + $0x38] sm:$0xff] %vm209, 0.0
        %218 = vst.msk [vmem:[%s173 + $0x40] sm:$0xff] %vm209, 0.0
        %219 = vst.msk [vmem:[%s173 + $0x48] sm:$0xff] %vm209, 0.0
        %220 = vst.msk [vmem:[%s173 + $0x50] sm:$0xff] %vm209, 0.0
        %221 = vst.msk [vmem:[%s173 + $0x58] sm:$0xff] %vm209, 0.0
        %222 = vst.msk [vmem:[%s173 + $0x60] sm:$0xff] %vm209, 0.0
        %223 = vst.msk [vmem:[%s173 + $0x68] sm:$0xff] %vm209, 0.0
        %224 = vst.msk [vmem:[%s173 + $0x70] sm:$0xff] %vm209, 0.0
        %225 = vst.msk [vmem:[%s173 + $0x78] sm:$0xff] %vm209, 0.0
        %s226 = sand.u32 %s58, 1
        %s227 = scalar_lea.sflag [#allocation4], %s226
        %s228 = sand.u32 %s58, 1
        %s229 = smul.addr %s228, 128
        %s230 = scalar_lea.vmem [#allocation5], %s229
        %s231 = sand.u32 %s84, 1
        %s232 = scalar_lea.sflag [#allocation7], %s231
        %s233 = sand.u32 %s84, 1
        %s234 = smul.addr %s233, 128
        %s235 = scalar_lea.vmem [#allocation6], %s234
        // Predicated region
        $region29: #{tpu_custom_call.1} parent=23 // pred_check
          %p236 = pneg %p68
        $region30: #{tpu_custom_call.1} parent=23 // pred_check_branch
          %238 = sbr.rel (%p236) target = $region32
        $region31: #{tpu_custom_call.1} parent=23 // pred_region
          %s239 = smul.u32 16, %s24
          %s241 = ssub.s32 2048, 2048
          %242 = vsyncadd %s227, %s241
          %s243 = smul.addr %s239, 128
          %s244 = scalar_lea.hbm %s2, %s243
          %s245 = sshll.u32 %s230, 4
          %s246 = int_to_ptr.vmem [resolvable:$true] %s245
          %251 = dma.vmem_to_hbm [thread:$0]  %s246, 2048, %s244, %s227, 128, 128, 8
        $region32: #{tpu_custom_call.1} parent=23 // pred_fallthru
          _
        // Predicated region
        $region33: #{tpu_custom_call.1} parent=23 // pred_check
          %p252 = pneg %p94
        $region34: #{tpu_custom_call.1} parent=23 // pred_check_branch
          %254 = sbr.rel (%p252) target = $region36
        $region35: #{tpu_custom_call.1} parent=23 // pred_region
          %s255 = smul.u32 16, %s24
          %s257 = ssub.s32 2048, 2048
          %258 = vsyncadd %s232, %s257
          %s259 = smul.addr %s255, 128
          %s260 = scalar_lea.hbm %s3, %s259
          %s261 = sshll.u32 %s235, 4
          %s262 = int_to_ptr.vmem [resolvable:$true] %s261
          %267 = dma.vmem_to_hbm [thread:$0]  %s262, 2048, %s260, %s232, 128, 128, 8
        $region36: #{tpu_custom_call.1} parent=23 // pred_fallthru
          _
      $region24: #{tpu_custom_call.1} parent=5 // pred_fallthru
        _
      %p268 = scmp.le.s32.totalorder 2, %s19
      // Predicated region
      $region37: #{tpu_custom_call.1} parent=5 // pred_check
        %p269 = pneg %p268
      $region38: #{tpu_custom_call.1} parent=5 // pred_check_branch
        %271 = sbr.rel (%p269) target = $region40
      $region39: #{tpu_custom_call.1} parent=5 // pred_region
        %s272 = ssub.s32 %s19, 2
        // Predicated region
        $region41: #{tpu_custom_call.1} parent=39 // pred_check
          %p273 = pneg %p74
        $region42: #{tpu_custom_call.1} parent=39 // pred_check_branch
          %275 = sbr.rel (%p273) target = $region44
        $region43: #{tpu_custom_call.1} parent=39 // pred_region
          %s276 = sand.u32 %s59, 1
          %s277 = scalar_lea.sflag [#allocation4], %s276
          %s278 = sand.u32 %s59, 1
          %s279 = smul.addr %s278, 128
          %s280 = scalar_lea.vmem [#allocation5], %s279
          %281 = dma.done %s277, 2048
        $region44: #{tpu_custom_call.1} parent=39 // pred_fallthru
          _
        // Predicated region
        $region45: #{tpu_custom_call.1} parent=39 // pred_check
          %p282 = pneg %p100
        $region46: #{tpu_custom_call.1} parent=39 // pred_check_branch
          %284 = sbr.rel (%p282) target = $region48
        $region47: #{tpu_custom_call.1} parent=39 // pred_region
          %s285 = sand.u32 %s85, 1
          %s286 = scalar_lea.sflag [#allocation7], %s285
          %s287 = sand.u32 %s85, 1
          %s288 = smul.addr %s287, 128
          %s289 = scalar_lea.vmem [#allocation6], %s288
          %290 = dma.done %s286, 2048
        $region48: #{tpu_custom_call.1} parent=39 // pred_fallthru
          _
      $region40: #{tpu_custom_call.1} parent=5 // pred_fallthru
        _
    $region6: #{tpu_custom_call.1} parent=1 // loop_footer
      %s23 = sadd.s32 1, %s19
    $region7: #{tpu_custom_call.1} parent=1 // loop_footer_branch
      %18 = sbr.rel target = $region3
    $region8: #{tpu_custom_call.1} parent=1 // loop_exit
      _
    %291 = vsyncpa [#allocation3], 1
    %s292 = scalar_lea.sflag [#allocation3], 1
    %293 = vsyncpa %s292, 1
    %294 = vsyncpa [#allocation4], 1
    %s295 = scalar_lea.sflag [#allocation4], 1
    %296 = vsyncpa %s295, 1
    %297 = vsyncpa [#allocation7], 1
    %s298 = scalar_lea.sflag [#allocation7], 1
    %299 = vsyncpa %s298, 1

</llo_original>
